<compile_context>
chip_gen: v6e
topology: v6e:2x2x1
jax: 0.10.0
libtpu: 0.0.40
codegen_flags: <defaults>
</compile_context>

<pallas_src>
import functools

import jax
import jax.numpy as jnp
from jax.experimental import pallas as pl
from jax.experimental.pallas import tpu as pltpu

LANES = 128
TARGET_BLOCK_BYTES = 4 << 20   # per-input, per-pipeline-buffer block budget


def _round_up(x, m):
    return ((x + m - 1) // m) * m


def _num_tensorcores():
    """Best-effort TensorCore count (2 on v7x, 1 on v5e/v6e); falls back to 2."""
    try:
        info = pltpu.get_tpu_info()
    except Exception:
        return 2
    for name in ("num_cores", "num_cores_per_chip", "cores_per_chip",
                 "tensorcores_per_chip", "num_tensorcores", "core_count"):
        v = getattr(info, name, None)
        if v is None:
            continue
        try:
            v = int(v)
        except Exception:
            continue
        if v >= 1:
            return max(1, min(v, 2))
    return 2


def _sublane_multiple(dtype):
    # (8,128) tile for 32-bit, (16,128) for 16-bit, (32,128) for 8-bit dtypes.
    return 8 * max(1, 4 // jnp.dtype(dtype).itemsize)


def _focal_terms(x, t, gamma):
    """Per-element focal terms in plain XLA (reference + ragged tail)."""
    x = x.astype(jnp.float32)
    t = t.astype(jnp.float32)
    bce = jnp.maximum(x, 0.0) - x * t + jnp.log1p(jnp.exp(-jnp.abs(x)))
    pt = jnp.exp(-bce)
    return (1.0 - pt) ** gamma * bce


def _focal_loss_kernel(x_ref, t_ref, out_ref, *, gamma, block_rows,
                       steps_per_core, n_blocks, last_rows, binary_targets):
    c = pl.program_id(0)
    i = pl.program_id(1)

    @pl.when(i == 0)
    def _():
        out_ref[...] = jnp.zeros_like(out_ref)

    step = c * steps_per_core + i

    # Skip compute entirely for clamped duplicate blocks (cross-core split of
    # an odd block count / more cores than blocks); only their DMA is wasted.
    @pl.when(step < n_blocks)
    def _():
        x = x_ref[...].astype(jnp.float32)
        t = t_ref[...].astype(jnp.float32)

        # Numerically stable binary_cross_entropy_with_logits, reduction='none':
        #   bce = max(x, 0) - x*t + log1p(exp(-|x|))
        z = jnp.exp(-jnp.abs(x))
        bce = jnp.maximum(x, 0.0) - x * t + jnp.log1p(z)

        if binary_targets:
            # For hard t in {0,1}: pt == sigmoid(x) if t==1 else sigmoid(-x),
            # derived from z with one EUP reciprocal instead of exp(-bce)
            # (3 -> 2 transcendentals per element).
            inv = pl.reciprocal(1.0 + z, approx=True)
            sig_x = jnp.where(x >= 0.0, inv, z * inv)          # sigmoid(x)
            pt = jnp.where(t >= 0.5, sig_x, 1.0 - sig_x)
        else:
            pt = jnp.exp(-bce)                                  # exact, any target
        one_minus_pt = 1.0 - pt

        # Trace-time gamma specialization: common integer gammas become VPU
        # multiplies instead of jnp.power's exp+log pair on the single EUP slot.
        g = float(gamma)
        if g == 0.0:
            mod = jnp.ones_like(one_minus_pt)
        elif g == 1.0:
            mod = one_minus_pt
        elif g == 2.0:
            mod = one_minus_pt * one_minus_pt
        elif g == 3.0:
            mod = (one_minus_pt * one_minus_pt) * one_minus_pt
        else:
            # Clamp: pt can exceed 1.0 by an ulp -> negative base -> NaN power.
            mod = jnp.power(jnp.maximum(one_minus_pt, 0.0), g)

        focal = mod * bce

        def fold(v):
            # (block_rows,128) -> (8,128) partial sum: pure vreg-wise VPU adds
            # (tile-aligned reshape), accumulated into the resident out block.
            return v.reshape(block_rows // 8, 8, LANES).sum(axis=0)

        if last_rows != block_rows:
            # Only the last real block can contain Pallas-padded garbage rows;
            # gate the iota/compare/select so every other block skips it.
            @pl.when(step == n_blocks - 1)
            def _():
                r = jax.lax.broadcasted_iota(jnp.int32, focal.shape, 0)
                # Keep this a select (NOT a multiply): padded rows may be NaN/Inf.
                out_ref[...] += fold(jnp.where(r < last_rows, focal, 0.0))

            @pl.when(step != n_blocks - 1)
            def _():
                out_ref[...] += fold(focal)
        else:
            out_ref[...] += fold(focal)


def focal_loss(logits, target, gamma=1.0, *, binary_targets=False,
               num_cores=None):
    """Focal loss matching PyTorch FocalLoss.forward (scalar mean).

    binary_targets=True enables a cheaper pt = sigmoid(+/-x) path valid only
    for hard {0,1} targets (uses an approximate EUP reciprocal).
    """
    assert logits.shape == target.shape
    n_valid = int(logits.size)
    assert n_valid > 0

    if num_cores is None:
        num_cores = _num_tensorcores()

    # Keep native dtypes; the kernel casts on load (halves HBM traffic for
    # sub-32-bit inputs and avoids a materialized f32 copy).
    x_flat = logits.reshape(-1)
    t_flat = target.reshape(-1)

    rows = n_valid // LANES
    main_n = rows * LANES
    tail = n_valid - main_n

    total = jnp.float32(0.0)

    if tail:
        # <128-element ragged tail folded in plain XLA instead of jnp.pad'ing
        # (and re-materializing) both full flattened inputs.
        total = total + jnp.sum(
            _focal_terms(x_flat[main_n:], t_flat[main_n:], gamma))

    if rows:
        xm = x_flat[:main_n] if tail else x_flat
        tm = t_flat[:main_n] if tail else t_flat
        # TODO(synk): for exotic input layouts this reshape may still relayout
        # outside the kernel; a grid over the original leading dims would avoid
        # it when the trailing dims are already lane-friendly.
        x2 = xm.reshape(rows, LANES)
        t2 = tm.reshape(rows, LANES)

        row_mult = max(_sublane_multiple(x2.dtype), _sublane_multiple(t2.dtype))
        max_item = max(x2.dtype.itemsize, t2.dtype.itemsize)
        cap_rows = max(row_mult,
                       (TARGET_BLOCK_BYTES // (LANES * max_item))
                       // row_mult * row_mult)
        block_rows = min(_round_up(rows, row_mult), cap_rows)

        n_blocks = pl.cdiv(rows, block_rows)
        steps_per_core = pl.cdiv(n_blocks, num_cores)
        grid = (num_cores, steps_per_core)
        last_rows = rows - (n_blocks - 1) * block_rows   # valid rows, last block

        def in_index_map(c, i):
            # Clamp so the cross-core split never requests a fully OOB block;
            # duplicated blocks are skipped (pl.when) in the kernel.
            g = c * steps_per_core + i
            return (jnp.minimum(g, n_blocks - 1), 0)

        kernel = functools.partial(
            _focal_loss_kernel,
            gamma=float(gamma),
            block_rows=block_rows,
            steps_per_core=steps_per_core,
            n_blocks=n_blocks,
            last_rows=last_rows,
            binary_targets=bool(binary_targets),
        )

        in_block_bytes = block_rows * LANES * (x2.dtype.itemsize
                                               + t2.dtype.itemsize)
        out_bytes = num_cores * 8 * LANES * 4
        # Double-buffered inputs + output + headroom; raised explicitly so the
        # ~16 MiB footprint of large blocks also fits v5e's 16 MiB default
        # scoped VMEM, while staying far under v7x's 64 MiB physical VMEM.
        vmem_limit = min(max(2 * in_block_bytes + 2 * out_bytes + (2 << 20),
                             8 << 20), 48 << 20)

        partials = pl.pallas_call(
            kernel,
            out_shape=jax.ShapeDtypeStruct((num_cores * 8, LANES), jnp.float32),
            grid_spec=pltpu.PrefetchScalarGridSpec(
                num_scalar_prefetch=0,
                grid=grid,
                in_specs=[
                    pl.BlockSpec((block_rows, LANES), in_index_map),
                    pl.BlockSpec((block_rows, LANES), in_index_map),
                ],
                out_specs=pl.BlockSpec((8, LANES), lambda c, i: (c, 0)),
            ),
            compiler_params=pltpu.CompilerParams(
                dimension_semantics=("parallel", "arbitrary"),
                vmem_limit_bytes=int(vmem_limit),
            ),
            cost_estimate=pl.CostEstimate(
                flops=12 * main_n,
                transcendentals=(2 if binary_targets else 3) * main_n,
                bytes_accessed=int(main_n * (x2.dtype.itemsize
                                             + t2.dtype.itemsize) + out_bytes),
            ),
        )(x2, t2)

        # Final cross-lane reduce of the tiny (num_cores*8, 128) partials in
        # plain XLA.  NOTE: per-lane f32 running sums drift ~1e-5 for N >~ 1e9.
        total = total + jnp.sum(partials)

    return total / jnp.float32(n_valid)


def _focal_loss_ref(logits, target, gamma=1.0):
    return jnp.mean(_focal_terms(logits, target, gamma))


if __name__ == "__main__":
    key = jax.random.PRNGKey(0)
    k1, k2, k3, k4 = jax.random.split(key, 4)

    # Small NCHW-shaped logits / binary targets, as the module's forward implies.
    x = jax.random.normal(k1, (2, 4, 16, 16), dtype=jnp.float32)
    y = (jax.random.uniform(k2, (2, 4, 16, 16)) > 0.5).astype(jnp.float32)

    # Exact default path, integer gammas.
    for gamma in (1.0, 2.0):
        loss = focal_loss(x, y, gamma=gamma)
        jax.block_until_ready(loss)
        ref = _focal_loss_ref(x, y, gamma=gamma)
        assert jnp.allclose(loss, ref, rtol=1e-5, atol=1e-6), (gamma, loss, ref)

    # Ragged size (N % 128 != 0 -> XLA tail + masked last block), soft targets,
    # non-integer gamma (clamped power path).
    x3 = jax.random.normal(k3, (3, 5, 7, 11), dtype=jnp.float32)
    y3 = jax.random.uniform(k4, (3, 5, 7, 11), dtype=jnp.float32)
    loss3 = focal_loss(x3, y3, gamma=1.5)
    jax.block_until_ready(loss3)
    ref3 = _focal_loss_ref(x3, y3, gamma=1.5)
    assert jnp.allclose(loss3, ref3, rtol=1e-5, atol=1e-6), (loss3, ref3)

    # Hard-target fast path (2 transcendentals/elem); loose tolerance only
    # because of the approximate EUP reciprocal.
    lossb = focal_loss(x, y, gamma=2.0, binary_targets=True)
    jax.block_until_ready(lossb)
    refb = _focal_loss_ref(x, y, gamma=2.0)
    assert jnp.allclose(lossb, refb, rtol=3e-2, atol=1e-4), (lossb, refb)

    print("KERNEL_OK")
</pallas_src>

<mosaic_0001>
module attributes {stable_mosaic.version = 11 : i64} {
  func.func @_focal_loss_kernel(%arg0: i32, %arg1: i32, %arg2: memref<16x128xf32, #tpu.memory_space<vmem>>, %arg3: memref<16x128xf32, #tpu.memory_space<vmem>>, %arg4: memref<8x128xf32, #tpu.memory_space<vmem>>) attributes {dimension_semantics = [#tpu.dimension_semantics<parallel>, #tpu.dimension_semantics<arbitrary>], iteration_bounds = array<i64: 2, 1>, scalar_prefetch = 0 : i64, scratch_operands = 0 : i64, tpu.core_type = #tpu.core_type<tc>, window_params = [{transform_indices = @transform_0, window_bounds = array<i64: 16, 128>}, {transform_indices = @transform_1, window_bounds = array<i64: 16, 128>}, {transform_indices = @transform_2, window_bounds = array<i64: 8, 128>}]} {
    %c0_i32 = arith.constant 0 : i32
    %0 = arith.cmpi eq, %arg1, %c0_i32 : i32
    %1 = arith.extui %0 : i1 to i32
    %c0_i32_0 = arith.constant 0 : i32
    %2 = arith.cmpi ne, %1, %c0_i32_0 : i32
    scf.if %2 {
      %cst = arith.constant 0.000000e+00 : f32
      %8 = vector.broadcast %cst : f32 to vector<8x128xf32>
      %c0 = arith.constant 0 : index
      %c0_3 = arith.constant 0 : index
      %9 = vector.load %arg4[%c0, %c0_3] : memref<8x128xf32, #tpu.memory_space<vmem>>, vector<8x128xf32>
      tpu.vector_store %arg4[%c0, %c0_3], %8 {strides = array<i32>} : memref<8x128xf32, #tpu.memory_space<vmem>>, vector<8x128xf32>,
    } else {
    }
    %c1_i32 = arith.constant 1 : i32
    %3 = arith.muli %arg0, %c1_i32 : i32
    %4 = arith.addi %3, %arg1 : i32
    %c1_i32_1 = arith.constant 1 : i32
    %5 = arith.cmpi slt, %4, %c1_i32_1 : i32
    %6 = arith.extui %5 : i1 to i32
    %c0_i32_2 = arith.constant 0 : i32
    %7 = arith.cmpi ne, %6, %c0_i32_2 : i32
    scf.if %7 {
      %c0 = arith.constant 0 : index
      %c0_3 = arith.constant 0 : index
      %8 = vector.load %arg2[%c0, %c0_3] : memref<16x128xf32, #tpu.memory_space<vmem>>, vector<16x128xf32>
      %c0_4 = arith.constant 0 : index
      %c0_5 = arith.constant 0 : index
      %9 = vector.load %arg3[%c0_4, %c0_5] : memref<16x128xf32, #tpu.memory_space<vmem>>, vector<16x128xf32>
      %10 = math.absf %8 : vector<16x128xf32>
      %cst = arith.constant 0.000000e+00 : f32
      %11 = vector.broadcast %cst : f32 to vector<16x128xf32>
      %12 = arith.subf %11, %10 : vector<16x128xf32>
      %13 = math.exp %12 : vector<16x128xf32>
      %cst_6 = arith.constant 0.000000e+00 : f32
      %14 = vector.broadcast %cst_6 : f32 to vector<16x128xf32>
      %15 = arith.maximumf %8, %14 : vector<16x128xf32>
      %16 = arith.mulf %8, %9 : vector<16x128xf32>
      %17 = arith.subf %15, %16 : vector<16x128xf32>
      %18 = math.log1p %13 : vector<16x128xf32>
      %19 = arith.addf %17, %18 : vector<16x128xf32>
      %cst_7 = arith.constant 0.000000e+00 : f32
      %20 = vector.broadcast %cst_7 : f32 to vector<16x128xf32>
      %21 = arith.subf %20, %19 : vector<16x128xf32>
      %22 = math.exp %21 : vector<16x128xf32>
      %cst_8 = arith.constant 1.000000e+00 : f32
      %23 = vector.broadcast %cst_8 : f32 to vector<16x128xf32>
      %24 = arith.subf %23, %22 : vector<16x128xf32>
      %25 = arith.mulf %24, %19 : vector<16x128xf32>
      %c0_9 = arith.constant 0 : index
      %c0_10 = arith.constant 0 : index
      %26 = vector.load %arg4[%c0_9, %c0_10] : memref<8x128xf32, #tpu.memory_space<vmem>>, vector<8x128xf32>
      %27 = vector.shape_cast %25 : vector<16x128xf32> to vector<2x8x128xf32>
      %cst_11 = arith.constant dense<0.000000e+00> : vector<8x128xf32>
      %28 = vector.multi_reduction <add>, %27, %cst_11 [0] : vector<2x8x128xf32> to vector<8x128xf32>
      %29 = arith.addf %26, %28 : vector<8x128xf32>
      %c0_12 = arith.constant 0 : index
      %c0_13 = arith.constant 0 : index
      %30 = vector.load %arg4[%c0_12, %c0_13] : memref<8x128xf32, #tpu.memory_space<vmem>>, vector<8x128xf32>
      tpu.vector_store %arg4[%c0_12, %c0_13], %29 {strides = array<i32>} : memref<8x128xf32, #tpu.memory_space<vmem>>, vector<8x128xf32>,
    } else {
    }
    return
  }
  func.func @transform_0(%arg0: i32, %arg1: i32) -> (i32, i32) {
    %c1_i32 = arith.constant 1 : i32
    %0 = arith.muli %arg0, %c1_i32 : i32
    %1 = arith.addi %0, %arg1 : i32
    %c0_i32 = arith.constant 0 : i32
    %2 = arith.minsi %1, %c0_i32 : i32
    %c0_i32_0 = arith.constant 0 : i32
    %c0_i32_1 = arith.constant 0 : i32
    return %2, %c0_i32_0 : i32, i32
  }
  func.func @transform_1(%arg0: i32, %arg1: i32) -> (i32, i32) {
    %c1_i32 = arith.constant 1 : i32
    %0 = arith.muli %arg0, %c1_i32 : i32
    %1 = arith.addi %0, %arg1 : i32
    %c0_i32 = arith.constant 0 : i32
    %2 = arith.minsi %1, %c0_i32 : i32
    %c0_i32_0 = arith.constant 0 : i32
    %c0_i32_1 = arith.constant 0 : i32
    return %2, %c0_i32_0 : i32, i32
  }
  func.func @transform_2(%arg0: i32, %arg1: i32) -> (i32, i32) {
    %c0_i32 = arith.constant 0 : i32
    %c0_i32_0 = arith.constant 0 : i32
    return %arg0, %c0_i32 : i32, i32
  }
}

</mosaic_0001>

<llo_original>
// kernel: tpu_custom_call.1
$region0: #{tpu_custom_call.1}
  #allocation0 [shape = 'u32[]', space=smem, size = 0x4, offset = 0x4, fixed_abs, tag = 'smem constant byte address 0x4 - core index']
  #allocation1 [shape = 'u32[144,128]{1,0:T(1,128)}', space=vmem, size = 0x12000, scoped, tag = 'internal scratch']
  %s0 = inlined_call_operand.hbm [shape: f32[16,128], index: 0, kind: input, shape index: {}]
  %s1 = inlined_call_operand.hbm [shape: f32[16,128], index: 1, kind: input, shape index: {}]
  %s2 = inlined_call_operand.hbm [shape: f32[16,128], index: 2, kind: output, shape index: {}]
  %s3 = sld [smem:[#allocation0]]
  $region57: #{tpu_custom_call.1} parent=0
    _
  %s5 = ssub.s32 1, %s3
  %s6 = scalar_select 0, %s5, %s3
  $region1: #{tpu_custom_call.1} parent=0
    #allocation2 [shape = 'u8[16384]{0}', space=vmem, size = 0x4000, scoped, tag = 'input window, operand 0']
    #allocation3 [shape = 's32[2]{0}', space=sflag, size = 0x8, scoped, tag = 'scoped memory for tpu_custom_call.1']
    #allocation4 [shape = 's32[2]{0}', space=sflag, size = 0x8, scoped, tag = 'scoped memory for tpu_custom_call.1']
    #allocation5 [shape = 'u8[16384]{0}', space=vmem, size = 0x4000, scoped, tag = 'input window, operand 1']
    #allocation6 [shape = 's32[2]{0}', space=sflag, size = 0x8, scoped, tag = 'scoped memory for tpu_custom_call.1']
    #allocation7 [shape = 'u8[8192]{0}', space=vmem, size = 0x2000, scoped, tag = 'output window, operand 0']
    %7 = vsyncpa [#allocation3], 0
    %s8 = scalar_lea.sflag [#allocation3], 1
    %9 = vsyncpa %s8, 0
    %10 = vsyncpa [#allocation6], 0
    %s11 = scalar_lea.sflag [#allocation6], 1
    %12 = vsyncpa %s11, 0
    %13 = vsyncpa [#allocation4], 0
    %s14 = scalar_lea.sflag [#allocation4], 1
    %15 = vsyncpa %s14, 0
    loop: start=0, step=1, limit=4
    $region2: #{tpu_custom_call.1} parent=1 // loop_pre_header
      _
    $region3: #{tpu_custom_call.1} parent=1 // loop_header
      %s17 = sphi 0, %s21
      %p18 = scmp.ge.s32.totalorder %s17, 4
      %s24 = sphi 0, %s36
      %s25 = sphi 0, %s32
      %s26 = sphi 0, %s24
      %s27 = sphi 0, %s25
      %s28 = sphi 0, %s26
      %s29 = sphi 0, %s27
      %s45 = sphi 0, %s47
      %s48 = sphi 0, %s45
      %s49 = sphi 0, %s48
      %s65 = sphi 0, %s49
      %s77 = sphi 0, %s79
      %s80 = sphi 0, %s77
      %s81 = sphi 0, %s80
      %s97 = sphi 0, %s81
      %s103 = sphi 0, %s105
      %s106 = sphi 0, %s103
      %s107 = sphi 0, %s106
      %s123 = sphi 0, %s107
    $region4: #{tpu_custom_call.1} parent=1 // loop_header_branch
      %20 = sbr.rel (%p18) target = $region8
    $region5: #{tpu_custom_call.1} parent=1 // loop_body
      %s22 = ssub.s32 %s17, 1
      %s23 = ssub.s32 %s17, 2
      %s30 = sadd.s32 1, %s25
      %p31 = scmp.ge.s32.totalorder %s30, 1
      %s32 = scalar_select %p31, 0, %s30
      %s33 = sadd.s32 1, %s24
      %s34 = scalar_select %p31, %s33, %s24
      %p35 = scmp.ge.s32.totalorder %s34, 2
      %s36 = scalar_select %p35, 0, %s34
      %s37 = sadd.s32 %s24, %s25
      %p38 = scmp.lt.s32.totalorder %s37, 0
      %s39 = scalar_select %p38, %s37, 0
      %s40 = sadd.s32 %s36, %s32
      %p41 = scmp.lt.s32.totalorder %s40, 0
      %s42 = scalar_select %p41, %s40, 0
      %s43 = ssub.s32 %s39, %s42
      %p44 = scmp.eq.s32.totalorder %s43, 0
      %s46 = sadd.s32 %s45, 1
      %s47 = scalar_select %p44, %s45, %s46
      %p50 = pneg %p44
      %p51 = scmp.eq.s32.totalorder %s17, 1
      %p52 = por %p50, %p51
      %p53 = scmp.ne.s32.totalorder %s45, %s48
      %p54 = scmp.eq.s32.totalorder %s17, 0
      %p55 = por %p53, %p54
      %p56 = scmp.ne.s32.totalorder %s45, %s48
      %p57 = scmp.eq.s32.totalorder %s22, 1
      %p58 = por %p56, %p57
      %p59 = scmp.ne.s32.totalorder %s48, %s49
      %p60 = scmp.eq.s32.totalorder %s22, 0
      %p61 = por %p59, %p60
      %p62 = scmp.ne.s32.totalorder %s48, %s49
      %p63 = scmp.eq.s32.totalorder %s23, 1
      %p64 = por %p62, %p63
      %p66 = scmp.ne.s32.totalorder %s49, %s65
      %p67 = scmp.eq.s32.totalorder %s23, 0
      %p68 = por %p66, %p67
      %s69 = sadd.s32 %s24, %s25
      %p70 = scmp.lt.s32.totalorder %s69, 0
      %s71 = scalar_select %p70, %s69, 0
      %s72 = sadd.s32 %s36, %s32
      %p73 = scmp.lt.s32.totalorder %s72, 0
      %s74 = scalar_select %p73, %s72, 0
      %s75 = ssub.s32 %s71, %s74
      %p76 = scmp.eq.s32.totalorder %s75, 0
      %s78 = sadd.s32 %s77, 1
      %s79 = scalar_select %p76, %s77, %s78
      %p82 = pneg %p76
      %p83 = scmp.eq.s32.totalorder %s17, 1
      %p84 = por %p82, %p83
      %p85 = scmp.ne.s32.totalorder %s77, %s80
      %p86 = scmp.eq.s32.totalorder %s17, 0
      %p87 = por %p85, %p86
      %p88 = scmp.ne.s32.totalorder %s77, %s80
      %p89 = scmp.eq.s32.totalorder %s22, 1
      %p90 = por %p88, %p89
      %p91 = scmp.ne.s32.totalorder %s80, %s81
      %p92 = scmp.eq.s32.totalorder %s22, 0
      %p93 = por %p91, %p92
      %p94 = scmp.ne.s32.totalorder %s80, %s81
      %p95 = scmp.eq.s32.totalorder %s23, 1
      %p96 = por %p94, %p95
      %p98 = scmp.ne.s32.totalorder %s81, %s97
      %p99 = scmp.eq.s32.totalorder %s23, 0
      %p100 = por %p98, %p99
      %s101 = ssub.s32 %s24, %s36
      %p102 = scmp.eq.s32.totalorder %s101, 0
      %s104 = sadd.s32 %s103, 1
      %s105 = scalar_select %p102, %s103, %s104
      %p108 = pneg %p102
      %p109 = scmp.eq.s32.totalorder %s17, 1
      %p110 = por %p108, %p109
      %p111 = scmp.ne.s32.totalorder %s103, %s106
      %p112 = scmp.eq.s32.totalorder %s17, 0
      %p113 = por %p111, %p112
      %p114 = scmp.ne.s32.totalorder %s103, %s106
      %p115 = scmp.eq.s32.totalorder %s22, 1
      %p116 = por %p114, %p115
      %p117 = scmp.ne.s32.totalorder %s106, %s107
      %p118 = scmp.eq.s32.totalorder %s22, 0
      %p119 = por %p117, %p118
      %p120 = scmp.ne.s32.totalorder %s106, %s107
      %p121 = scmp.eq.s32.totalorder %s23, 1
      %p122 = por %p120, %p121
      %p124 = scmp.ne.s32.totalorder %s107, %s123
      %p125 = scmp.eq.s32.totalorder %s23, 0
      %p126 = por %p124, %p125
      %p127 = scmp.le.s32.totalorder 1, %s17
      %p128 = scmp.lt.s32.totalorder %s17, 3
      %p129 = pnand %p127, %p128
      %p130 = pneg %p129
      // Predicated region
      $region9: #{tpu_custom_call.1} parent=5 // pred_check
        _
      $region10: #{tpu_custom_call.1} parent=5 // pred_check_branch
        %132 = sbr.rel (%p129) target = $region12
      $region11: #{tpu_custom_call.1} parent=5 // pred_region
        %s133 = ssub.s32 %s17, 1
      $region12: #{tpu_custom_call.1} parent=5 // pred_fallthru
        _
      %p134 = scmp.lt.s32.totalorder %s17, 2
      // Predicated region
      $region13: #{tpu_custom_call.1} parent=5 // pred_check
        %p135 = pneg %p134
      $region14: #{tpu_custom_call.1} parent=5 // pred_check_branch
        %137 = sbr.rel (%p135) target = $region16
      $region15: #{tpu_custom_call.1} parent=5 // pred_region
        // Predicated region
        $region17: #{tpu_custom_call.1} parent=15 // pred_check
          %p138 = pneg %p55
        $region18: #{tpu_custom_call.1} parent=15 // pred_check_branch
          %140 = sbr.rel (%p138) target = $region20
        $region19: #{tpu_custom_call.1} parent=15 // pred_region
          %s141 = sand.u32 %s45, 1
          %s142 = scalar_lea.sflag [#allocation3], %s141
          %s143 = sand.u32 %s45, 1
          %s144 = smul.addr %s143, 16
          %s145 = scalar_lea.vmem [#allocation2], %s144
          %s146 = sadd.s32 %s24, %s25
          %p147 = scmp.lt.s32.totalorder %s146, 0
          %s148 = scalar_select %p147, %s146, 0
          %s149 = smul.u32 2, %s148
          %s151 = ssub.s32 256, 256
          %152 = vsyncadd %s142, %s151
          %s153 = smul.addr %s149, 128
          %s154 = scalar_lea.hbm %s0, %s153
          %s155 = sshll.u32 %s145, 4
          %s156 = int_to_ptr.vmem [resolvable:$true] %s155
          %161 = dma.hbm_to_vmem [thread:$0]  %s154, 256, %s156, %s142, 128, 128, 8
        $region20: #{tpu_custom_call.1} parent=15 // pred_fallthru
          _
        // Predicated region
        $region21: #{tpu_custom_call.1} parent=15 // pred_check
          %p162 = pneg %p87
        $region22: #{tpu_custom_call.1} parent=15 // pred_check_branch
          %164 = sbr.rel (%p162) target = $region24
        $region23: #{tpu_custom_call.1} parent=15 // pred_region
          %s165 = sand.u32 %s77, 1
          %s166 = scalar_lea.sflag [#allocation6], %s165
          %s167 = sand.u32 %s77, 1
          %s168 = smul.addr %s167, 16
          %s169 = scalar_lea.vmem [#allocation5], %s168
          %s170 = sadd.s32 %s24, %s25
          %p171 = scmp.lt.s32.totalorder %s170, 0
          %s172 = scalar_select %p171, %s170, 0
          %s173 = smul.u32 2, %s172
          %s175 = ssub.s32 256, 256
          %176 = vsyncadd %s166, %s175
          %s177 = smul.addr %s173, 128
          %s178 = scalar_lea.hbm %s1, %s177
          %s179 = sshll.u32 %s169, 4
          %s180 = int_to_ptr.vmem [resolvable:$true] %s179
          %185 = dma.hbm_to_vmem [thread:$0]  %s178, 256, %s180, %s166, 128, 128, 8
        $region24: #{tpu_custom_call.1} parent=15 // pred_fallthru
          _
      $region16: #{tpu_custom_call.1} parent=5 // pred_fallthru
        _
      %p186 = scmp.le.s32.totalorder 1, %s17
      %p187 = scmp.lt.s32.totalorder %s17, 3
      %p188 = pnand %p186, %p187
      %p189 = pneg %p188
      // Predicated region
      $region25: #{tpu_custom_call.1} parent=5 // pred_check
        _
      $region26: #{tpu_custom_call.1} parent=5 // pred_check_branch
        %191 = sbr.rel (%p188) target = $region28
      $region27: #{tpu_custom_call.1} parent=5 // pred_region
        %s192 = ssub.s32 %s17, 1
        %s193 = sand.u32 %s48, 1
        %s194 = scalar_lea.sflag [#allocation3], %s193
        %s195 = sand.u32 %s48, 1
        %s196 = smul.addr %s195, 16
        %s197 = scalar_lea.vmem [#allocation2], %s196
        // Predicated region
        $region29: #{tpu_custom_call.1} parent=27 // pred_check
          %p198 = pneg %p61
        $region30: #{tpu_custom_call.1} parent=27 // pred_check_branch
          %200 = sbr.rel (%p198) target = $region32
        $region31: #{tpu_custom_call.1} parent=27 // pred_region
          %201 = dma.done %s194, 256
        $region32: #{tpu_custom_call.1} parent=27 // pred_fallthru
          _
        %s202 = sand.u32 %s80, 1
        %s203 = scalar_lea.sflag [#allocation6], %s202
        %s204 = sand.u32 %s80, 1
        %s205 = smul.addr %s204, 16
        %s206 = scalar_lea.vmem [#allocation5], %s205
        // Predicated region
        $region33: #{tpu_custom_call.1} parent=27 // pred_check
          %p207 = pneg %p93
        $region34: #{tpu_custom_call.1} parent=27 // pred_check_branch
          %209 = sbr.rel (%p207) target = $region36
        $region35: #{tpu_custom_call.1} parent=27 // pred_region
          %210 = dma.done %s203, 256
        $region36: #{tpu_custom_call.1} parent=27 // pred_fallthru
          _
        %s211 = sand.u32 %s48, 1
        %s212 = scalar_lea.sflag [#allocation3], %s211
        %s213 = sand.u32 %s48, 1
        %s214 = smul.addr %s213, 16
        %s215 = scalar_lea.vmem [#allocation2], %s214
        %p216 = pneg %p61
        %p217 = pneg %p58
        %s218 = sand.u32 %s80, 1
        %s219 = scalar_lea.sflag [#allocation6], %s218
        %s220 = sand.u32 %s80, 1
        %s221 = smul.addr %s220, 16
        %s222 = scalar_lea.vmem [#allocation5], %s221
        %p223 = pneg %p93
        %p224 = pneg %p90
        %p225 = pneg %p119
        %p226 = pneg %p116
        %s227 = sand.u32 %s106, 1
        %s228 = scalar_lea.sflag [#allocation4], %s227
        %s229 = sand.u32 %s106, 1
        %s230 = smul.addr %s229, 8
        %s231 = scalar_lea.vmem [#allocation7], %s230
        %s232 = sadd.s32 %s26, %s27
        %p233 = scmp.lt.s32.totalorder %s232, 0
        %s234 = scalar_select %p233, %s232, 0
        %s235 = smul.u32 2, %s234
        %s236 = sadd.s32 %s26, %s27
        %p237 = scmp.lt.s32.totalorder %s236, 0
        %s238 = scalar_select %p237, %s236, 0
        %s239 = smul.u32 2, %s238
        %p240 = scmp.eq.s32.totalorder %s27, 0
        // Predicated region
        $region37: #{tpu_custom_call.1} parent=27 // pred_check
          %p241 = pneg %p240
        $region38: #{tpu_custom_call.1} parent=27 // pred_check_branch
          %243 = sbr.rel (%p241) target = $region40
        $region39: #{tpu_custom_call.1} parent=27 // pred_region
          %244 = vst [vmem:[%s231] sm:$0xff] 0.0
        $region40: #{tpu_custom_call.1} parent=27 // pred_fallthru
          _
        %s245 = sadd.s32 %s26, %s27
        %p246 = scmp.lt.s32.totalorder %s245, 1
        // Predicated region
        $region41: #{tpu_custom_call.1} parent=27 // pred_check
          %p247 = pneg %p246
        $region42: #{tpu_custom_call.1} parent=27 // pred_check_branch
          %249 = sbr.rel (%p247) target = $region44
        $region43: #{tpu_custom_call.1} parent=27 // pred_region
          %v250 = vld [vmem:[%s197] sm:$0xff]
          %v251 = vld [vmem:[%s197 + $0x8] sm:$0xff]
          %v252 = vld [vmem:[%s206] sm:$0xff]
          %v253 = vld [vmem:[%s206 + $0x8] sm:$0xff]
          %v254 = vand.u32 2147483647, %v250
          %v255 = vand.u32 2147483647, %v251
          %v256 = vsub.f32 0.0, %v254
          %v257 = vsub.f32 0.0, %v255
          %v258 = vmul.f32 %v256, 1.442695
          %v259 = vpow.pop %v258
          %v260 = vmul.f32 %v257, 1.442695
          %v261 = vpow.pop %v260
          %v262 = vmax.f32 %v250, 0.0
          %v263 = vmax.f32 %v251, 0.0
          %v264 = vmul.f32 %v250, %v252
          %v265 = vmul.f32 %v251, %v253
          %v266 = vsub.f32 %v262, %v264
          %v267 = vsub.f32 %v263, %v265
          %v268 = vadd.f32 %v259, 1.0
          %v269 = vlog2.pop %v268
          %v270 = vmul.f32 %v269, 0.6931472
          %v271 = vmul.f32 -0.5, %v259
          %v272 = vadd.f32 %v271, 1.0
          %v273 = vmul.f32 %v272, %v259
          %v274 = vand.u32 2147483647, %v259
          %vm275 = vcmp.lt.f32.partialorder %v274, 0.0004427343
          %v276 = vsel %vm275, %v273, %v270
          %v277 = vadd.f32 %v261, 1.0
          %v278 = vlog2.pop %v277
          %v279 = vmul.f32 %v278, 0.6931472
          %v280 = vmul.f32 -0.5, %v261
          %v281 = vadd.f32 %v280, 1.0
          %v282 = vmul.f32 %v281, %v261
          %v283 = vand.u32 2147483647, %v261
          %vm284 = vcmp.lt.f32.partialorder %v283, 0.0004427343
          %v285 = vsel %vm284, %v282, %v279
          %v286 = vadd.f32 %v266, %v276
          %v287 = vadd.f32 %v267, %v285
          %v288 = vsub.f32 0.0, %v286
          %v289 = vsub.f32 0.0, %v287
          %v290 = vmul.f32 %v288, 1.442695
          %v291 = vpow.pop %v290
          %v292 = vmul.f32 %v289, 1.442695
          %v293 = vpow.pop %v292
          %v294 = vsub.f32 1.0, %v291
          %v295 = vsub.f32 1.0, %v293
          %v296 = vmul.f32 %v294, %v286
          %v297 = vmul.f32 %v295, %v287
          %v298 = vld [vmem:[%s231] sm:$0xff]
          %v299 = vadd.f32 %v296, %v297
          %v300 = vadd.f32 %v298, %v299
          %301 = vst [vmem:[%s231] sm:$0xff] %v300
        $region44: #{tpu_custom_call.1} parent=27 // pred_fallthru
          _
        %s302 = sand.u32 %s106, 1
        %s303 = scalar_lea.sflag [#allocation4], %s302
        %s304 = sand.u32 %s106, 1
        %s305 = smul.addr %s304, 8
        %s306 = scalar_lea.vmem [#allocation7], %s305
        // Predicated region
        $region45: #{tpu_custom_call.1} parent=27 // pred_check
          %p307 = pneg %p116
        $region46: #{tpu_custom_call.1} parent=27 // pred_check_branch
          %309 = sbr.rel (%p307) target = $region48
        $region47: #{tpu_custom_call.1} parent=27 // pred_region
          %s311 = ssub.s32 128, 128
          %312 = vsyncadd %s303, %s311
          %s313 = smul.addr %s26, 128
          %s314 = scalar_lea.hbm %s2, %s313
          %s316 = sshll.u32 %s306, 4
          %s317 = int_to_ptr.vmem [resolvable:$true] %s316
          %319 = dma.vmem_to_hbm [thread:$0]  %s317, 128, %s314, %s303
        $region48: #{tpu_custom_call.1} parent=27 // pred_fallthru
          _
      $region28: #{tpu_custom_call.1} parent=5 // pred_fallthru
        _
      %p320 = scmp.le.s32.totalorder 2, %s17
      // Predicated region
      $region49: #{tpu_custom_call.1} parent=5 // pred_check
        %p321 = pneg %p320
      $region50: #{tpu_custom_call.1} parent=5 // pred_check_branch
        %323 = sbr.rel (%p321) target = $region52
      $region51: #{tpu_custom_call.1} parent=5 // pred_region
        %s324 = ssub.s32 %s17, 2
        // Predicated region
        $region53: #{tpu_custom_call.1} parent=51 // pred_check
          %p325 = pneg %p122
        $region54: #{tpu_custom_call.1} parent=51 // pred_check_branch
          %327 = sbr.rel (%p325) target = $region56
        $region55: #{tpu_custom_call.1} parent=51 // pred_region
          %s328 = sand.u32 %s107, 1
          %s329 = scalar_lea.sflag [#allocation4], %s328
          %s330 = sand.u32 %s107, 1
          %s331 = smul.addr %s330, 8
          %s332 = scalar_lea.vmem [#allocation7], %s331
          %333 = dma.done %s329, 128
        $region56: #{tpu_custom_call.1} parent=51 // pred_fallthru
          _
      $region52: #{tpu_custom_call.1} parent=5 // pred_fallthru
        _
    $region6: #{tpu_custom_call.1} parent=1 // loop_footer
      %s21 = sadd.s32 1, %s17
    $region7: #{tpu_custom_call.1} parent=1 // loop_footer_branch
      %16 = sbr.rel target = $region3
    $region8: #{tpu_custom_call.1} parent=1 // loop_exit
      _
    %334 = vsyncpa [#allocation3], 1
    %s335 = scalar_lea.sflag [#allocation3], 1
    %336 = vsyncpa %s335, 1
    %337 = vsyncpa [#allocation6], 1
    %s338 = scalar_lea.sflag [#allocation6], 1
    %339 = vsyncpa %s338, 1
    %340 = vsyncpa [#allocation4], 1
    %s341 = scalar_lea.sflag [#allocation4], 1
    %342 = vsyncpa %s341, 1

</llo_original>
